<compile_context>
chip_gen: v7x
topology: tpu7x:2x2x1
jax: 0.10.0
libtpu: 0.0.40
codegen_flags: <defaults>
</compile_context>

<pallas_src>
import jax
import jax.numpy as jnp
from jax.experimental import pallas as pl
from jax.experimental.pallas import tpu as pltpu


def _round_up(x, mult):
    return ((x + mult - 1) // mult) * mult


# --------------------------------------------------------------------------- kernels
def conv_stats_kernel(p_ref, w_ref, conv_ref, sum_ref, ssq_ref):
    # p_ref:    (tm, Kpad)    bf16 patch-matrix tile
    # w_ref:    (Kpad, Cpad)  bf16 flattened conv weight (resident)
    # conv_ref: (tm, Cpad)    f32 conv output tile
    # sum_ref:  (8, Cpad)     f32 per-channel sum accumulator (resident over inner axis)
    # ssq_ref:  (8, Cpad)     f32 per-channel sum-of-squares accumulator
    conv = jnp.dot(p_ref[...], w_ref[...], preferred_element_type=jnp.float32)
    conv_ref[...] = conv

    @pl.when(pl.program_id(1) == 0)
    def _():
        sum_ref[...] = jnp.zeros_like(sum_ref)
        ssq_ref[...] = jnp.zeros_like(ssq_ref)

    tm, cpad = conv.shape
    c3 = conv.reshape(tm // 8, 8, cpad)          # sublane-aligned: pure VPU adds
    sum_ref[...] += jnp.sum(c3, axis=0)
    ssq_ref[...] += jnp.sum(c3 * c3, axis=0)


def bn_relu_kernel(conv_ref, scale_ref, shift_ref, o_ref):
    # Single fused elementwise pass: per-channel affine (BatchNorm) + ReLU.
    o_ref[...] = jnp.maximum(conv_ref[...] * scale_ref[...] + shift_ref[...], 0.0)


# --------------------------------------------------------------------------- wrapper
def _im2col_nhwc(x_nhwc, kh, kw, stride, padding):
    """Extract conv patches. Returns (N, Ho, Wo, Kh*Kw*Cin) with (kh, kw, cin) ordering."""
    n, h, w, cin = x_nhwc.shape
    xp = jnp.pad(x_nhwc, ((0, 0), (padding, padding), (padding, padding), (0, 0)))
    hp, wp = h + 2 * padding, w + 2 * padding
    ho = (hp - kh) // stride + 1
    wo = (wp - kw) // stride + 1
    cols = []
    for i in range(kh):
        for j in range(kw):
            patch = xp[:, i:i + (ho - 1) * stride + 1:stride,
                          j:j + (wo - 1) * stride + 1:stride, :]
            cols.append(patch)                               # (N, Ho, Wo, Cin)
    patches = jnp.stack(cols, axis=3)                        # (N, Ho, Wo, Kh*Kw, Cin)
    return patches.reshape(n, ho, wo, kh * kw * cin), ho, wo


def conv_block(x_nchw, weight, bias, gamma, beta, *,
               stride=1, padding=0, eps=1e-5, tm=256, tm2_cap=1024):
    """ConvBlock forward. x_nchw: (N, Cin, H, W); weight: (Cout, Cin, Kh, Kw).

    `bias` is accepted for API parity but is mathematically cancelled by the
    training-mode BatchNorm that follows, so it is not used in the kernels.
    """
    del bias  # cancels: (conv + b) - mean(conv + b) == conv - mean(conv)

    cout, cin, kh, kw = weight.shape
    n = x_nchw.shape[0]

    # bf16 activations for the MXU; the im2col patch matrix is also half the HBM bytes.
    x_nhwc = jnp.transpose(x_nchw, (0, 2, 3, 1)).astype(jnp.bfloat16)
    patches, ho, wo = _im2col_nhwc(x_nhwc, kh, kw, stride, padding)
    m = n * ho * wo
    kdim = kh * kw * cin

    cpad = _round_up(cout, 128)          # lane-dense outputs / full MXU width
    kpad = _round_up(kdim, 128)          # fully aligned contraction dim

    tm = _round_up(max(tm, 8), 8)
    tm = min(tm, _round_up(m, 8))
    mpad = _round_up(m, tm)
    grid_m = mpad // tm
    p_shards = 2 if (grid_m >= 2 and grid_m % 2 == 0) else 1   # v7x: 2 TensorCores
    s_steps = grid_m // p_shards

    p_mat = patches.reshape(m, kdim)
    if (mpad - m) or (kpad - kdim):
        # zero rows -> zero stats contribution; zero cols -> zero dot contribution
        p_mat = jnp.pad(p_mat, ((0, mpad - m), (0, kpad - kdim)))

    # (Cout, Cin, Kh, Kw) -> (Kh, Kw, Cin, Cout) -> (Kh*Kw*Cin, Cout), matching patch ordering.
    w_mat = jnp.transpose(weight, (2, 3, 1, 0)).reshape(kdim, cout).astype(jnp.float32)
    w_mat = jnp.pad(w_mat, ((0, kpad - kdim), (0, cpad - cout))).astype(jnp.bfloat16)
    g_row = jnp.pad(gamma.astype(jnp.float32).reshape(1, cout), ((0, 0), (0, cpad - cout)))
    b_row = jnp.pad(beta.astype(jnp.float32).reshape(1, cout), ((0, 0), (0, cpad - cout)))

    # ---------------- Pass 1: tiled conv matmul + per-channel stats ----------------
    vmem1 = (2 * (tm * kpad * 2 + tm * cpad * 4)          # double-buffered patch + conv tiles
             + 2 * kpad * cpad * 2                        # weight (double-buffered)
             + 4 * 8 * cpad * 4)                          # stats accumulators
    vmem1 = min(max(int(vmem1 * 1.5) + (2 << 20), 16 << 20), 64 << 20)

    cost1 = pl.CostEstimate(
        flops=2 * mpad * kpad * cpad,
        transcendentals=0,
        bytes_accessed=2 * (mpad * kpad + kpad * cpad)
                       + 4 * (mpad * cpad + 2 * 8 * cpad * p_shards))

    conv_flat, sum_rows, ssq_rows = pl.pallas_call(
        conv_stats_kernel,
        out_shape=(
            jax.ShapeDtypeStruct((mpad, cpad), jnp.float32),
            jax.ShapeDtypeStruct((8 * p_shards, cpad), jnp.float32),
            jax.ShapeDtypeStruct((8 * p_shards, cpad), jnp.float32),
        ),
        grid=(p_shards, s_steps),
        in_specs=[
            pl.BlockSpec((tm, kpad), lambda p, i: (p * s_steps + i, 0)),
            pl.BlockSpec((kpad, cpad), lambda p, i: (0, 0)),
        ],
        out_specs=(
            pl.BlockSpec((tm, cpad), lambda p, i: (p * s_steps + i, 0)),
            pl.BlockSpec((8, cpad), lambda p, i: (p, 0)),   # resident accumulator (per shard)
            pl.BlockSpec((8, cpad), lambda p, i: (p, 0)),   # resident accumulator (per shard)
        ),
        compiler_params=pltpu.CompilerParams(
            dimension_semantics=("parallel", "arbitrary"),
            vmem_limit_bytes=vmem1),
        cost_estimate=cost1,
    )(p_mat, w_mat)

    # ---------------- Tiny per-channel BN affine (scale/shift) ----------------
    ch_sum = jnp.sum(sum_rows, axis=0, keepdims=True)       # collapse sublanes + shards
    ch_ssq = jnp.sum(ssq_rows, axis=0, keepdims=True)
    inv_m = 1.0 / float(m)                                   # divide by REAL rows only
    mean = ch_sum * inv_m
    var = jnp.maximum(ch_ssq * inv_m - mean * mean, 0.0)     # biased var (PyTorch training mode)
    scale = g_row * jax.lax.rsqrt(var + eps)
    shift = b_row - mean * scale                             # padded channels: gamma=beta=0 -> 0

    # ---------------- Pass 2: fused BN + ReLU (memory-bound; big row tile) ----------------
    tm2 = tm
    for f in range(1, grid_m + 1):                           # largest tile that tiles mpad evenly
        if grid_m % f == 0 and tm * f <= max(tm2_cap, tm):
            tm2 = tm * f
    grid2 = mpad // tm2

    vmem2 = 2 * 2 * tm2 * cpad * 4 + 4 * cpad * 4
    vmem2 = min(max(int(vmem2 * 1.5) + (2 << 20), 16 << 20), 64 << 20)

    cost2 = pl.CostEstimate(
        flops=3 * mpad * cpad,
        transcendentals=0,
        bytes_accessed=4 * (2 * mpad * cpad + 2 * cpad))

    out_flat = pl.pallas_call(
        bn_relu_kernel,
        out_shape=jax.ShapeDtypeStruct((mpad, cpad), jnp.float32),
        grid=(grid2,),
        in_specs=[
            pl.BlockSpec((tm2, cpad), lambda i: (i, 0)),
            pl.BlockSpec((1, cpad), lambda i: (0, 0)),
            pl.BlockSpec((1, cpad), lambda i: (0, 0)),
        ],
        out_specs=pl.BlockSpec((tm2, cpad), lambda i: (i, 0)),
        input_output_aliases={0: 0},                          # write BN+ReLU in place of conv
        compiler_params=pltpu.CompilerParams(
            dimension_semantics=("parallel",),
            vmem_limit_bytes=vmem2),
        cost_estimate=cost2,
    )(conv_flat, scale, shift)

    # Slice off M/Cout padding, (M, Cout) -> (N, Ho, Wo, Cout) -> NCHW (module semantics).
    out_nhwc = out_flat[:m, :cout].reshape(n, ho, wo, cout)
    return jnp.transpose(out_nhwc, (0, 3, 1, 2))


# --------------------------------------------------------------------------- reference
def _reference(x, weight, bias, gamma, beta, stride, padding, eps, *, matmul_dtype=jnp.float32):
    """Pure-JAX ConvBlock reference (conv WITH bias; bias cancels in BN)."""
    xc = x.astype(matmul_dtype)
    wc = weight.astype(matmul_dtype)
    precision = jax.lax.Precision.HIGHEST if matmul_dtype == jnp.float32 else None
    conv = jax.lax.conv_general_dilated(
        xc, wc, window_strides=(stride, stride),
        padding=((padding, padding), (padding, padding)),
        dimension_numbers=("NCHW", "OIHW", "NCHW"),
        preferred_element_type=jnp.float32,
        precision=precision)
    conv = conv.astype(jnp.float32) + bias.reshape(1, -1, 1, 1)
    mean = jnp.mean(conv, axis=(0, 2, 3), keepdims=True)
    var = jnp.mean((conv - mean) ** 2, axis=(0, 2, 3), keepdims=True)
    xhat = (conv - mean) * jax.lax.rsqrt(var + eps)
    y = xhat * gamma.reshape(1, -1, 1, 1) + beta.reshape(1, -1, 1, 1)
    return jnp.maximum(y, 0.0)


if __name__ == "__main__":
    # ConvBlock(in_channels=4, out_channels=8, kernel_size=3, stride=1, padding=1)
    in_channels, out_channels, kernel_size, stride, padding = 4, 8, 3, 1, 1
    N, H, W = 2, 16, 16

    key = jax.random.PRNGKey(0)
    kx, kw_, kb = jax.random.split(key, 3)

    x = jax.random.normal(kx, (N, in_channels, H, W), dtype=jnp.float32)

    # Deterministic synthetic parameter init (shapes match nn.Conv2d / nn.BatchNorm2d).
    fan_in = in_channels * kernel_size * kernel_size
    bound = 1.0 / float(fan_in) ** 0.5
    weight = jax.random.uniform(
        kw_, (out_channels, in_channels, kernel_size, kernel_size),
        minval=-bound, maxval=bound, dtype=jnp.float32)
    bias = jax.random.uniform(kb, (out_channels,), minval=-bound, maxval=bound,
                              dtype=jnp.float32)
    gamma = jnp.ones((out_channels,), dtype=jnp.float32)   # BN weight init
    beta = jnp.zeros((out_channels,), dtype=jnp.float32)   # BN bias init

    # tm=128 -> 4 row tiles: exercises multi-step stats accumulation, the 2-shard
    # parallel axis, and the merged (tm2=512) BN+ReLU tile.
    fwd = jax.jit(lambda xx, ww, bb, gg, be: conv_block(
        xx, ww, bb, gg, be, stride=stride, padding=padding, tm=128))
    out = fwd(x, weight, bias, gamma, beta)
    out = jax.block_until_ready(out)
    assert out.shape == (N, out_channels, H, W), out.shape

    # Tight check vs. a reference that uses the same bf16 matmul operands (validates
    # kernel structure / stats exactly).
    ref_bf16 = _reference(x, weight, bias, gamma, beta, stride, padding, 1e-5,
                          matmul_dtype=jnp.bfloat16)
    err_bf16 = float(jnp.max(jnp.abs(out - ref_bf16)))
    assert err_bf16 < 2e-3, f"max err vs bf16-matched reference: {err_bf16}"

    # Looser check vs. the full-f32 reference: the bf16-MXU operands are an intentional
    # precision/perf tradeoff (per perf review); outputs are unit-variance after BN.
    ref_f32 = _reference(x, weight, bias, gamma, beta, stride, padding, 1e-5,
                         matmul_dtype=jnp.float32)
    err_f32 = float(jnp.max(jnp.abs(out - ref_f32)))
    assert err_f32 < 5e-2, f"max err vs f32 reference: {err_f32}"

    print("KERNEL_OK")
</pallas_src>

<mosaic_0001>
module attributes {stable_mosaic.version = 11 : i64} {
  func.func @bn_relu_kernel(%arg0: i32, %arg1: memref<512x128xf32, #tpu.memory_space<vmem>>, %arg2: memref<1x128xf32, #tpu.memory_space<vmem>>, %arg3: memref<1x128xf32, #tpu.memory_space<vmem>>, %arg4: memref<512x128xf32, #tpu.memory_space<vmem>>) attributes {dimension_semantics = [#tpu.dimension_semantics<parallel>], iteration_bounds = array<i64: 1>, scalar_prefetch = 0 : i64, scratch_operands = 0 : i64, tpu.core_type = #tpu.core_type<tc>, window_params = [{transform_indices = @transform_0, window_bounds = array<i64: 512, 128>}, {pipeline_mode = #tpu.pipeline_mode<synchronous>, transform_indices = @transform_1, window_bounds = array<i64: 1, 128>}, {pipeline_mode = #tpu.pipeline_mode<synchronous>, transform_indices = @transform_2, window_bounds = array<i64: 1, 128>}, {transform_indices = @transform_3, window_bounds = array<i64: 512, 128>}]} {
    %c0 = arith.constant 0 : index
    %c0_0 = arith.constant 0 : index
    %0 = vector.load %arg1[%c0, %c0_0] : memref<512x128xf32, #tpu.memory_space<vmem>>, vector<512x128xf32>
    %c0_1 = arith.constant 0 : index
    %c0_2 = arith.constant 0 : index
    %1 = vector.load %arg2[%c0_1, %c0_2] : memref<1x128xf32, #tpu.memory_space<vmem>>, vector<1x128xf32>
    %2 = vector.broadcast %1 : vector<1x128xf32> to vector<512x128xf32>
    %3 = arith.mulf %0, %2 : vector<512x128xf32>
    %c0_3 = arith.constant 0 : index
    %c0_4 = arith.constant 0 : index
    %4 = vector.load %arg3[%c0_3, %c0_4] : memref<1x128xf32, #tpu.memory_space<vmem>>, vector<1x128xf32>
    %5 = vector.broadcast %4 : vector<1x128xf32> to vector<512x128xf32>
    %6 = arith.addf %3, %5 : vector<512x128xf32>
    %cst = arith.constant 0.000000e+00 : f32
    %7 = vector.broadcast %cst : f32 to vector<512x128xf32>
    %8 = arith.maximumf %6, %7 : vector<512x128xf32>
    %c0_5 = arith.constant 0 : index
    %c0_6 = arith.constant 0 : index
    %9 = vector.load %arg4[%c0_5, %c0_6] : memref<512x128xf32, #tpu.memory_space<vmem>>, vector<512x128xf32>
    tpu.vector_store %arg4[%c0_5, %c0_6], %8 {strides = array<i32>} : memref<512x128xf32, #tpu.memory_space<vmem>>, vector<512x128xf32>,
    return
  }
  func.func @transform_0(%arg0: i32) -> (i32, i32) {
    %c0_i32 = arith.constant 0 : i32
    %c0_i32_0 = arith.constant 0 : i32
    return %arg0, %c0_i32 : i32, i32
  }
  func.func @transform_1(%arg0: i32) -> (i32, i32) {
    %c0_i32 = arith.constant 0 : i32
    %c0_i32_0 = arith.constant 0 : i32
    %c0_i32_1 = arith.constant 0 : i32
    return %c0_i32, %c0_i32_0 : i32, i32
  }
  func.func @transform_2(%arg0: i32) -> (i32, i32) {
    %c0_i32 = arith.constant 0 : i32
    %c0_i32_0 = arith.constant 0 : i32
    %c0_i32_1 = arith.constant 0 : i32
    return %c0_i32, %c0_i32_0 : i32, i32
  }
  func.func @transform_3(%arg0: i32) -> (i32, i32) {
    %c0_i32 = arith.constant 0 : i32
    %c0_i32_0 = arith.constant 0 : i32
    return %arg0, %c0_i32 : i32, i32
  }
}

module attributes {stable_mosaic.version = 11 : i64} {
  func.func @conv_stats_kernel(%arg0: i32, %arg1: i32, %arg2: memref<128x128xbf16, #tpu.memory_space<vmem>>, %arg3: memref<128x128xbf16, #tpu.memory_space<vmem>>, %arg4: memref<128x128xf32, #tpu.memory_space<vmem>>, %arg5: memref<8x128xf32, #tpu.memory_space<vmem>>, %arg6: memref<8x128xf32, #tpu.memory_space<vmem>>) attributes {dimension_semantics = [#tpu.dimension_semantics<parallel>, #tpu.dimension_semantics<arbitrary>], iteration_bounds = array<i64: 2, 2>, scalar_prefetch = 0 : i64, scratch_operands = 0 : i64, tpu.core_type = #tpu.core_type<tc>, window_params = [{transform_indices = @transform_0, window_bounds = array<i64: 128, 128>}, {pipeline_mode = #tpu.pipeline_mode<synchronous>, transform_indices = @transform_1, window_bounds = array<i64: 128, 128>}, {transform_indices = @transform_2, window_bounds = array<i64: 128, 128>}, {transform_indices = @transform_3, window_bounds = array<i64: 8, 128>}, {transform_indices = @transform_4, window_bounds = array<i64: 8, 128>}]} {
    %c0 = arith.constant 0 : index
    %c0_0 = arith.constant 0 : index
    %0 = vector.load %arg2[%c0, %c0_0] : memref<128x128xbf16, #tpu.memory_space<vmem>>, vector<128x128xbf16>
    %c0_1 = arith.constant 0 : index
    %c0_2 = arith.constant 0 : index
    %1 = vector.load %arg3[%c0_1, %c0_2] : memref<128x128xbf16, #tpu.memory_space<vmem>>, vector<128x128xbf16>
    %cst = arith.constant dense<0.000000e+00> : vector<128x128xf32>
    %2 = tpu.matmul %0, %1, %cst {dimension_numbers = #tpu.dot_dimension_numbers<[1], [0], [0], [1], [0, 0, 1, 1], [], []>} : vector<128x128xbf16>, vector<128x128xbf16>, vector<128x128xf32> -> vector<128x128xf32>
    %c0_3 = arith.constant 0 : index
    %c0_4 = arith.constant 0 : index
    %3 = vector.load %arg4[%c0_3, %c0_4] : memref<128x128xf32, #tpu.memory_space<vmem>>, vector<128x128xf32>
    tpu.vector_store %arg4[%c0_3, %c0_4], %2 {strides = array<i32>} : memref<128x128xf32, #tpu.memory_space<vmem>>, vector<128x128xf32>,
    %c0_i32 = arith.constant 0 : i32
    %4 = arith.cmpi eq, %arg1, %c0_i32 : i32
    %5 = arith.extui %4 : i1 to i32
    %c0_i32_5 = arith.constant 0 : i32
    %6 = arith.cmpi ne, %5, %c0_i32_5 : i32
    scf.if %6 {
      %cst_16 = arith.constant 0.000000e+00 : f32
      %17 = vector.broadcast %cst_16 : f32 to vector<8x128xf32>
      %c0_17 = arith.constant 0 : index
      %c0_18 = arith.constant 0 : index
      %18 = vector.load %arg5[%c0_17, %c0_18] : memref<8x128xf32, #tpu.memory_space<vmem>>, vector<8x128xf32>
      tpu.vector_store %arg5[%c0_17, %c0_18], %17 {strides = array<i32>} : memref<8x128xf32, #tpu.memory_space<vmem>>, vector<8x128xf32>,
      %cst_19 = arith.constant 0.000000e+00 : f32
      %19 = vector.broadcast %cst_19 : f32 to vector<8x128xf32>
      %c0_20 = arith.constant 0 : index
      %c0_21 = arith.constant 0 : index
      %20 = vector.load %arg6[%c0_20, %c0_21] : memref<8x128xf32, #tpu.memory_space<vmem>>, vector<8x128xf32>
      tpu.vector_store %arg6[%c0_20, %c0_21], %19 {strides = array<i32>} : memref<8x128xf32, #tpu.memory_space<vmem>>, vector<8x128xf32>,
    } else {
    }
    %7 = vector.shape_cast %2 : vector<128x128xf32> to vector<16x8x128xf32>
    %c0_6 = arith.constant 0 : index
    %c0_7 = arith.constant 0 : index
    %8 = vector.load %arg5[%c0_6, %c0_7] : memref<8x128xf32, #tpu.memory_space<vmem>>, vector<8x128xf32>
    %cst_8 = arith.constant dense<0.000000e+00> : vector<8x128xf32>
    %9 = vector.multi_reduction <add>, %7, %cst_8 [0] : vector<16x8x128xf32> to vector<8x128xf32>
    %10 = arith.addf %8, %9 : vector<8x128xf32>
    %c0_9 = arith.constant 0 : index
    %c0_10 = arith.constant 0 : index
    %11 = vector.load %arg5[%c0_9, %c0_10] : memref<8x128xf32, #tpu.memory_space<vmem>>, vector<8x128xf32>
    tpu.vector_store %arg5[%c0_9, %c0_10], %10 {strides = array<i32>} : memref<8x128xf32, #tpu.memory_space<vmem>>, vector<8x128xf32>,
    %c0_11 = arith.constant 0 : index
    %c0_12 = arith.constant 0 : index
    %12 = vector.load %arg6[%c0_11, %c0_12] : memref<8x128xf32, #tpu.memory_space<vmem>>, vector<8x128xf32>
    %13 = arith.mulf %7, %7 : vector<16x8x128xf32>
    %cst_13 = arith.constant dense<0.000000e+00> : vector<8x128xf32>
    %14 = vector.multi_reduction <add>, %13, %cst_13 [0] : vector<16x8x128xf32> to vector<8x128xf32>
    %15 = arith.addf %12, %14 : vector<8x128xf32>
    %c0_14 = arith.constant 0 : index
    %c0_15 = arith.constant 0 : index
    %16 = vector.load %arg6[%c0_14, %c0_15] : memref<8x128xf32, #tpu.memory_space<vmem>>, vector<8x128xf32>
    tpu.vector_store %arg6[%c0_14, %c0_15], %15 {strides = array<i32>} : memref<8x128xf32, #tpu.memory_space<vmem>>, vector<8x128xf32>,
    return
  }
  func.func @transform_0(%arg0: i32, %arg1: i32) -> (i32, i32) {
    %c2_i32 = arith.constant 2 : i32
    %0 = arith.muli %arg0, %c2_i32 : i32
    %1 = arith.addi %0, %arg1 : i32
    %c0_i32 = arith.constant 0 : i32
    %c0_i32_0 = arith.constant 0 : i32
    return %1, %c0_i32 : i32, i32
  }
  func.func @transform_1(%arg0: i32, %arg1: i32) -> (i32, i32) {
    %c0_i32 = arith.constant 0 : i32
    %c0_i32_0 = arith.constant 0 : i32
    %c0_i32_1 = arith.constant 0 : i32
    return %c0_i32, %c0_i32_0 : i32, i32
  }
  func.func @transform_2(%arg0: i32, %arg1: i32) -> (i32, i32) {
    %c2_i32 = arith.constant 2 : i32
    %0 = arith.muli %arg0, %c2_i32 : i32
    %1 = arith.addi %0, %arg1 : i32
    %c0_i32 = arith.constant 0 : i32
    %c0_i32_0 = arith.constant 0 : i32
    return %1, %c0_i32 : i32, i32
  }
  func.func @transform_3(%arg0: i32, %arg1: i32) -> (i32, i32) {
    %c0_i32 = arith.constant 0 : i32
    %c0_i32_0 = arith.constant 0 : i32
    return %arg0, %c0_i32 : i32, i32
  }
  func.func @transform_4(%arg0: i32, %arg1: i32) -> (i32, i32) {
    %c0_i32 = arith.constant 0 : i32
    %c0_i32_0 = arith.constant 0 : i32
    return %arg0, %c0_i32 : i32, i32
  }
}

</mosaic_0001>

<llo_original>
// kernel: _lambda_.3
$region0: #{_lambda_.3}
  #allocation0 [shape = 'u32[]', space=smem, size = 0x4, offset = 0x4, fixed_abs, tag = 'smem constant byte address 0x4 - core index']
  #allocation1 [shape = 'u32[144,128]{1,0:T(1,128)}', space=vmem, size = 0x12000, scoped, tag = 'internal scratch']
  %s0 = inlined_call_operand.vmem [shape: f32[512,128], index: 0, kind: input, shape index: {}, may-alias: {0,3}]
  %s1 = inlined_call_operand.vmem [shape: f32[1,128], index: 1, kind: input, shape index: {}]
  %s2 = inlined_call_operand.vmem [shape: f32[1,128], index: 2, kind: input, shape index: {}]
  %s3 = inlined_call_operand.vmem [shape: f32[512,128], index: 3, kind: output, shape index: {}, may-alias: {0,3}]
  %s4 = sld [smem:[#allocation0]]
  $region22: #{_lambda_.3} parent=0
    _
  %s6 = ssub.s32 1, %s4
  %s7 = scalar_select 0, %s6, %s4
  // Predicated region
  $region2: #{_lambda_.3} parent=0 // pred_check
    _
  $region3: #{_lambda_.3} parent=0 // pred_check_branch
    %9 = sbr.rel (0) target = $region5
  $region4: #{_lambda_.3} parent=0 // pred_region
    _
  $region5: #{_lambda_.3} parent=0 // pred_fallthru
    _
  // Predicated region
  $region6: #{_lambda_.3} parent=0 // pred_check
    _
  $region7: #{_lambda_.3} parent=0 // pred_check_branch
    %11 = sbr.rel (0) target = $region9
  $region8: #{_lambda_.3} parent=0 // pred_region
    _
  $region9: #{_lambda_.3} parent=0 // pred_fallthru
    _
  // Predicated region
  $region10: #{_lambda_.3} parent=0 // pred_check
    _
  $region11: #{_lambda_.3} parent=0 // pred_check_branch
    %13 = sbr.rel (0) target = $region13
  $region12: #{_lambda_.3} parent=0 // pred_region
    _
  $region13: #{_lambda_.3} parent=0 // pred_fallthru
    _
  %v14 = vld [vmem:[%s0] sm:$0xff]
  %v15 = vld [vmem:[%s0 + $0x8] sm:$0xff]
  %v16 = vld [vmem:[%s0 + $0x10] sm:$0xff]
  %v17 = vld [vmem:[%s0 + $0x18] sm:$0xff]
  %v18 = vld [vmem:[%s0 + $0x20] sm:$0xff]
  %v19 = vld [vmem:[%s0 + $0x28] sm:$0xff]
  %v20 = vld [vmem:[%s0 + $0x30] sm:$0xff]
  %v21 = vld [vmem:[%s0 + $0x38] sm:$0xff]
  %v22 = vld [vmem:[%s0 + $0x40] sm:$0xff]
  %v23 = vld [vmem:[%s0 + $0x48] sm:$0xff]
  %v24 = vld [vmem:[%s0 + $0x50] sm:$0xff]
  %v25 = vld [vmem:[%s0 + $0x58] sm:$0xff]
  %v26 = vld [vmem:[%s0 + $0x60] sm:$0xff]
  %v27 = vld [vmem:[%s0 + $0x68] sm:$0xff]
  %v28 = vld [vmem:[%s0 + $0x70] sm:$0xff]
  %v29 = vld [vmem:[%s0 + $0x78] sm:$0xff]
  %v30 = vld [vmem:[%s0 + $0x80] sm:$0xff]
  %v31 = vld [vmem:[%s0 + $0x88] sm:$0xff]
  %v32 = vld [vmem:[%s0 + $0x90] sm:$0xff]
  %v33 = vld [vmem:[%s0 + $0x98] sm:$0xff]
  %v34 = vld [vmem:[%s0 + $0xa0] sm:$0xff]
  %v35 = vld [vmem:[%s0 + $0xa8] sm:$0xff]
  %v36 = vld [vmem:[%s0 + $0xb0] sm:$0xff]
  %v37 = vld [vmem:[%s0 + $0xb8] sm:$0xff]
  %v38 = vld [vmem:[%s0 + $0xc0] sm:$0xff]
  %v39 = vld [vmem:[%s0 + $0xc8] sm:$0xff]
  %v40 = vld [vmem:[%s0 + $0xd0] sm:$0xff]
  %v41 = vld [vmem:[%s0 + $0xd8] sm:$0xff]
  %v42 = vld [vmem:[%s0 + $0xe0] sm:$0xff]
  %v43 = vld [vmem:[%s0 + $0xe8] sm:$0xff]
  %v44 = vld [vmem:[%s0 + $0xf0] sm:$0xff]
  %v45 = vld [vmem:[%s0 + $0xf8] sm:$0xff]
  %v46 = vld [vmem:[%s0 + $0x100] sm:$0xff]
  %v47 = vld [vmem:[%s0 + $0x108] sm:$0xff]
  %v48 = vld [vmem:[%s0 + $0x110] sm:$0xff]
  %v49 = vld [vmem:[%s0 + $0x118] sm:$0xff]
  %v50 = vld [vmem:[%s0 + $0x120] sm:$0xff]
  %v51 = vld [vmem:[%s0 + $0x128] sm:$0xff]
  %v52 = vld [vmem:[%s0 + $0x130] sm:$0xff]
  %v53 = vld [vmem:[%s0 + $0x138] sm:$0xff]
  %v54 = vld [vmem:[%s0 + $0x140] sm:$0xff]
  %v55 = vld [vmem:[%s0 + $0x148] sm:$0xff]
  %v56 = vld [vmem:[%s0 + $0x150] sm:$0xff]
  %v57 = vld [vmem:[%s0 + $0x158] sm:$0xff]
  %v58 = vld [vmem:[%s0 + $0x160] sm:$0xff]
  %v59 = vld [vmem:[%s0 + $0x168] sm:$0xff]
  %v60 = vld [vmem:[%s0 + $0x170] sm:$0xff]
  %v61 = vld [vmem:[%s0 + $0x178] sm:$0xff]
  %v62 = vld [vmem:[%s0 + $0x180] sm:$0xff]
  %v63 = vld [vmem:[%s0 + $0x188] sm:$0xff]
  %v64 = vld [vmem:[%s0 + $0x190] sm:$0xff]
  %v65 = vld [vmem:[%s0 + $0x198] sm:$0xff]
  %v66 = vld [vmem:[%s0 + $0x1a0] sm:$0xff]
  %v67 = vld [vmem:[%s0 + $0x1a8] sm:$0xff]
  %v68 = vld [vmem:[%s0 + $0x1b0] sm:$0xff]
  %v69 = vld [vmem:[%s0 + $0x1b8] sm:$0xff]
  %v70 = vld [vmem:[%s0 + $0x1c0] sm:$0xff]
  %v71 = vld [vmem:[%s0 + $0x1c8] sm:$0xff]
  %v72 = vld [vmem:[%s0 + $0x1d0] sm:$0xff]
  %v73 = vld [vmem:[%s0 + $0x1d8] sm:$0xff]
  %v74 = vld [vmem:[%s0 + $0x1e0] sm:$0xff]
  %v75 = vld [vmem:[%s0 + $0x1e8] sm:$0xff]
  %v76 = vld [vmem:[%s0 + $0x1f0] sm:$0xff]
  %v77 = vld [vmem:[%s0 + $0x1f8] sm:$0xff]
  %v78 = vld [vmem:[%s1] sm:$0x1]
  %v80 = vlaneseq
  %v81 = vshrl.u32 %v80, 7
  %v82 = vsub.s32 0, %v81
  %v83 = vrot.slane %v78, %v82
  %v85 = vmul.f32 %v14, %v83
  %v86 = vmul.f32 %v15, %v83
  %v87 = vmul.f32 %v16, %v83
  %v88 = vmul.f32 %v17, %v83
  %v89 = vmul.f32 %v18, %v83
  %v90 = vmul.f32 %v19, %v83
  %v91 = vmul.f32 %v20, %v83
  %v92 = vmul.f32 %v21, %v83
  %v93 = vmul.f32 %v22, %v83
  %v94 = vmul.f32 %v23, %v83
  %v95 = vmul.f32 %v24, %v83
  %v96 = vmul.f32 %v25, %v83
  %v97 = vmul.f32 %v26, %v83
  %v98 = vmul.f32 %v27, %v83
  %v99 = vmul.f32 %v28, %v83
  %v100 = vmul.f32 %v29, %v83
  %v101 = vmul.f32 %v30, %v83
  %v102 = vmul.f32 %v31, %v83
  %v103 = vmul.f32 %v32, %v83
  %v104 = vmul.f32 %v33, %v83
  %v105 = vmul.f32 %v34, %v83
  %v106 = vmul.f32 %v35, %v83
  %v107 = vmul.f32 %v36, %v83
  %v108 = vmul.f32 %v37, %v83
  %v109 = vmul.f32 %v38, %v83
  %v110 = vmul.f32 %v39, %v83
  %v111 = vmul.f32 %v40, %v83
  %v112 = vmul.f32 %v41, %v83
  %v113 = vmul.f32 %v42, %v83
  %v114 = vmul.f32 %v43, %v83
  %v115 = vmul.f32 %v44, %v83
  %v116 = vmul.f32 %v45, %v83
  %v117 = vmul.f32 %v46, %v83
  %v118 = vmul.f32 %v47, %v83
  %v119 = vmul.f32 %v48, %v83
  %v120 = vmul.f32 %v49, %v83
  %v121 = vmul.f32 %v50, %v83
  %v122 = vmul.f32 %v51, %v83
  %v123 = vmul.f32 %v52, %v83
  %v124 = vmul.f32 %v53, %v83
  %v125 = vmul.f32 %v54, %v83
  %v126 = vmul.f32 %v55, %v83
  %v127 = vmul.f32 %v56, %v83
  %v128 = vmul.f32 %v57, %v83
  %v129 = vmul.f32 %v58, %v83
  %v130 = vmul.f32 %v59, %v83
  %v131 = vmul.f32 %v60, %v83
  %v132 = vmul.f32 %v61, %v83
  %v133 = vmul.f32 %v62, %v83
  %v134 = vmul.f32 %v63, %v83
  %v135 = vmul.f32 %v64, %v83
  %v136 = vmul.f32 %v65, %v83
  %v137 = vmul.f32 %v66, %v83
  %v138 = vmul.f32 %v67, %v83
  %v139 = vmul.f32 %v68, %v83
  %v140 = vmul.f32 %v69, %v83
  %v141 = vmul.f32 %v70, %v83
  %v142 = vmul.f32 %v71, %v83
  %v143 = vmul.f32 %v72, %v83
  %v144 = vmul.f32 %v73, %v83
  %v145 = vmul.f32 %v74, %v83
  %v146 = vmul.f32 %v75, %v83
  %v147 = vmul.f32 %v76, %v83
  %v148 = vmul.f32 %v77, %v83
  %v149 = vld [vmem:[%s2] sm:$0x1]
  %v151 = vlaneseq
  %v152 = vshrl.u32 %v151, 7
  %v153 = vsub.s32 0, %v152
  %v154 = vrot.slane %v149, %v153
  %v156 = vadd.f32 %v85, %v154
  %v157 = vadd.f32 %v86, %v154
  %v158 = vadd.f32 %v87, %v154
  %v159 = vadd.f32 %v88, %v154
  %v160 = vadd.f32 %v89, %v154
  %v161 = vadd.f32 %v90, %v154
  %v162 = vadd.f32 %v91, %v154
  %v163 = vadd.f32 %v92, %v154
  %v164 = vadd.f32 %v93, %v154
  %v165 = vadd.f32 %v94, %v154
  %v166 = vadd.f32 %v95, %v154
  %v167 = vadd.f32 %v96, %v154
  %v168 = vadd.f32 %v97, %v154
  %v169 = vadd.f32 %v98, %v154
  %v170 = vadd.f32 %v99, %v154
  %v171 = vadd.f32 %v100, %v154
  %v172 = vadd.f32 %v101, %v154
  %v173 = vadd.f32 %v102, %v154
  %v174 = vadd.f32 %v103, %v154
  %v175 = vadd.f32 %v104, %v154
  %v176 = vadd.f32 %v105, %v154
  %v177 = vadd.f32 %v106, %v154
  %v178 = vadd.f32 %v107, %v154
  %v179 = vadd.f32 %v108, %v154
  %v180 = vadd.f32 %v109, %v154
  %v181 = vadd.f32 %v110, %v154
  %v182 = vadd.f32 %v111, %v154
  %v183 = vadd.f32 %v112, %v154
  %v184 = vadd.f32 %v113, %v154
  %v185 = vadd.f32 %v114, %v154
  %v186 = vadd.f32 %v115, %v154
  %v187 = vadd.f32 %v116, %v154
  %v188 = vadd.f32 %v117, %v154
  %v189 = vadd.f32 %v118, %v154
  %v190 = vadd.f32 %v119, %v154
  %v191 = vadd.f32 %v120, %v154
  %v192 = vadd.f32 %v121, %v154
  %v193 = vadd.f32 %v122, %v154
  %v194 = vadd.f32 %v123, %v154
  %v195 = vadd.f32 %v124, %v154
  %v196 = vadd.f32 %v125, %v154
  %v197 = vadd.f32 %v126, %v154
  %v198 = vadd.f32 %v127, %v154
  %v199 = vadd.f32 %v128, %v154
  %v200 = vadd.f32 %v129, %v154
  %v201 = vadd.f32 %v130, %v154
  %v202 = vadd.f32 %v131, %v154
  %v203 = vadd.f32 %v132, %v154
  %v204 = vadd.f32 %v133, %v154
  %v205 = vadd.f32 %v134, %v154
  %v206 = vadd.f32 %v135, %v154
  %v207 = vadd.f32 %v136, %v154
  %v208 = vadd.f32 %v137, %v154
  %v209 = vadd.f32 %v138, %v154
  %v210 = vadd.f32 %v139, %v154
  %v211 = vadd.f32 %v140, %v154
  %v212 = vadd.f32 %v141, %v154
  %v213 = vadd.f32 %v142, %v154
  %v214 = vadd.f32 %v143, %v154
  %v215 = vadd.f32 %v144, %v154
  %v216 = vadd.f32 %v145, %v154
  %v217 = vadd.f32 %v146, %v154
  %v218 = vadd.f32 %v147, %v154
  %v219 = vadd.f32 %v148, %v154
  %v220 = vmax.f32 %v156, 0.0
  %v221 = vmax.f32 %v157, 0.0
  %v222 = vmax.f32 %v158, 0.0
  %v223 = vmax.f32 %v159, 0.0
  %v224 = vmax.f32 %v160, 0.0
  %v225 = vmax.f32 %v161, 0.0
  %v226 = vmax.f32 %v162, 0.0
  %v227 = vmax.f32 %v163, 0.0
  %v228 = vmax.f32 %v164, 0.0
  %v229 = vmax.f32 %v165, 0.0
  %v230 = vmax.f32 %v166, 0.0
  %v231 = vmax.f32 %v167, 0.0
  %v232 = vmax.f32 %v168, 0.0
  %v233 = vmax.f32 %v169, 0.0
  %v234 = vmax.f32 %v170, 0.0
  %v235 = vmax.f32 %v171, 0.0
  %v236 = vmax.f32 %v172, 0.0
  %v237 = vmax.f32 %v173, 0.0
  %v238 = vmax.f32 %v174, 0.0
  %v239 = vmax.f32 %v175, 0.0
  %v240 = vmax.f32 %v176, 0.0
  %v241 = vmax.f32 %v177, 0.0
  %v242 = vmax.f32 %v178, 0.0
  %v243 = vmax.f32 %v179, 0.0
  %v244 = vmax.f32 %v180, 0.0
  %v245 = vmax.f32 %v181, 0.0
  %v246 = vmax.f32 %v182, 0.0
  %v247 = vmax.f32 %v183, 0.0
  %v248 = vmax.f32 %v184, 0.0
  %v249 = vmax.f32 %v185, 0.0
  %v250 = vmax.f32 %v186, 0.0
  %v251 = vmax.f32 %v187, 0.0
  %v252 = vmax.f32 %v188, 0.0
  %v253 = vmax.f32 %v189, 0.0
  %v254 = vmax.f32 %v190, 0.0
  %v255 = vmax.f32 %v191, 0.0
  %v256 = vmax.f32 %v192, 0.0
  %v257 = vmax.f32 %v193, 0.0
  %v258 = vmax.f32 %v194, 0.0
  %v259 = vmax.f32 %v195, 0.0
  %v260 = vmax.f32 %v196, 0.0
  %v261 = vmax.f32 %v197, 0.0
  %v262 = vmax.f32 %v198, 0.0
  %v263 = vmax.f32 %v199, 0.0
  %v264 = vmax.f32 %v200, 0.0
  %v265 = vmax.f32 %v201, 0.0
  %v266 = vmax.f32 %v202, 0.0
  %v267 = vmax.f32 %v203, 0.0
  %v268 = vmax.f32 %v204, 0.0
  %v269 = vmax.f32 %v205, 0.0
  %v270 = vmax.f32 %v206, 0.0
  %v271 = vmax.f32 %v207, 0.0
  %v272 = vmax.f32 %v208, 0.0
  %v273 = vmax.f32 %v209, 0.0
  %v274 = vmax.f32 %v210, 0.0
  %v275 = vmax.f32 %v211, 0.0
  %v276 = vmax.f32 %v212, 0.0
  %v277 = vmax.f32 %v213, 0.0
  %v278 = vmax.f32 %v214, 0.0
  %v279 = vmax.f32 %v215, 0.0
  %v280 = vmax.f32 %v216, 0.0
  %v281 = vmax.f32 %v217, 0.0
  %v282 = vmax.f32 %v218, 0.0
  %v283 = vmax.f32 %v219, 0.0
  %284 = vst [vmem:[%s3] sm:$0xff] %v220
  %285 = vst [vmem:[%s3 + $0x8] sm:$0xff] %v221
  %286 = vst [vmem:[%s3 + $0x10] sm:$0xff] %v222
  %287 = vst [vmem:[%s3 + $0x18] sm:$0xff] %v223
  %288 = vst [vmem:[%s3 + $0x20] sm:$0xff] %v224
  %289 = vst [vmem:[%s3 + $0x28] sm:$0xff] %v225
  %290 = vst [vmem:[%s3 + $0x30] sm:$0xff] %v226
  %291 = vst [vmem:[%s3 + $0x38] sm:$0xff] %v227
  %292 = vst [vmem:[%s3 + $0x40] sm:$0xff] %v228
  %293 = vst [vmem:[%s3 + $0x48] sm:$0xff] %v229
  %294 = vst [vmem:[%s3 + $0x50] sm:$0xff] %v230
  %295 = vst [vmem:[%s3 + $0x58] sm:$0xff] %v231
  %296 = vst [vmem:[%s3 + $0x60] sm:$0xff] %v232
  %297 = vst [vmem:[%s3 + $0x68] sm:$0xff] %v233
  %298 = vst [vmem:[%s3 + $0x70] sm:$0xff] %v234
  %299 = vst [vmem:[%s3 + $0x78] sm:$0xff] %v235
  %300 = vst [vmem:[%s3 + $0x80] sm:$0xff] %v236
  %301 = vst [vmem:[%s3 + $0x88] sm:$0xff] %v237
  %302 = vst [vmem:[%s3 + $0x90] sm:$0xff] %v238
  %303 = vst [vmem:[%s3 + $0x98] sm:$0xff] %v239
  %304 = vst [vmem:[%s3 + $0xa0] sm:$0xff] %v240
  %305 = vst [vmem:[%s3 + $0xa8] sm:$0xff] %v241
  %306 = vst [vmem:[%s3 + $0xb0] sm:$0xff] %v242
  %307 = vst [vmem:[%s3 + $0xb8] sm:$0xff] %v243
  %308 = vst [vmem:[%s3 + $0xc0] sm:$0xff] %v244
  %309 = vst [vmem:[%s3 + $0xc8] sm:$0xff] %v245
  %310 = vst [vmem:[%s3 + $0xd0] sm:$0xff] %v246
  %311 = vst [vmem:[%s3 + $0xd8] sm:$0xff] %v247
  %312 = vst [vmem:[%s3 + $0xe0] sm:$0xff] %v248
  %313 = vst [vmem:[%s3 + $0xe8] sm:$0xff] %v249
  %314 = vst [vmem:[%s3 + $0xf0] sm:$0xff] %v250
  %315 = vst [vmem:[%s3 + $0xf8] sm:$0xff] %v251
  %316 = vst [vmem:[%s3 + $0x100] sm:$0xff] %v252
  %317 = vst [vmem:[%s3 + $0x108] sm:$0xff] %v253
  %318 = vst [vmem:[%s3 + $0x110] sm:$0xff] %v254
  %319 = vst [vmem:[%s3 + $0x118] sm:$0xff] %v255
  %320 = vst [vmem:[%s3 + $0x120] sm:$0xff] %v256
  %321 = vst [vmem:[%s3 + $0x128] sm:$0xff] %v257
  %322 = vst [vmem:[%s3 + $0x130] sm:$0xff] %v258
  %323 = vst [vmem:[%s3 + $0x138] sm:$0xff] %v259
  %324 = vst [vmem:[%s3 + $0x140] sm:$0xff] %v260
  %325 = vst [vmem:[%s3 + $0x148] sm:$0xff] %v261
  %326 = vst [vmem:[%s3 + $0x150] sm:$0xff] %v262
  %327 = vst [vmem:[%s3 + $0x158] sm:$0xff] %v263
  %328 = vst [vmem:[%s3 + $0x160] sm:$0xff] %v264
  %329 = vst [vmem:[%s3 + $0x168] sm:$0xff] %v265
  %330 = vst [vmem:[%s3 + $0x170] sm:$0xff] %v266
  %331 = vst [vmem:[%s3 + $0x178] sm:$0xff] %v267
  %332 = vst [vmem:[%s3 + $0x180] sm:$0xff] %v268
  %333 = vst [vmem:[%s3 + $0x188] sm:$0xff] %v269
  %334 = vst [vmem:[%s3 + $0x190] sm:$0xff] %v270
  %335 = vst [vmem:[%s3 + $0x198] sm:$0xff] %v271
  %336 = vst [vmem:[%s3 + $0x1a0] sm:$0xff] %v272
  %337 = vst [vmem:[%s3 + $0x1a8] sm:$0xff] %v273
  %338 = vst [vmem:[%s3 + $0x1b0] sm:$0xff] %v274
  %339 = vst [vmem:[%s3 + $0x1b8] sm:$0xff] %v275
  %340 = vst [vmem:[%s3 + $0x1c0] sm:$0xff] %v276
  %341 = vst [vmem:[%s3 + $0x1c8] sm:$0xff] %v277
  %342 = vst [vmem:[%s3 + $0x1d0] sm:$0xff] %v278
  %343 = vst [vmem:[%s3 + $0x1d8] sm:$0xff] %v279
  %344 = vst [vmem:[%s3 + $0x1e0] sm:$0xff] %v280
  %345 = vst [vmem:[%s3 + $0x1e8] sm:$0xff] %v281
  %346 = vst [vmem:[%s3 + $0x1f0] sm:$0xff] %v282
  %347 = vst [vmem:[%s3 + $0x1f8] sm:$0xff] %v283
  // Predicated region
  $region14: #{_lambda_.3} parent=0 // pred_check
    _
  $region15: #{_lambda_.3} parent=0 // pred_check_branch
    %349 = sbr.rel (0) target = $region17
  $region16: #{_lambda_.3} parent=0 // pred_region
    _
  $region17: #{_lambda_.3} parent=0 // pred_fallthru
    _
  // Predicated region
  $region18: #{_lambda_.3} parent=0 // pred_check
    _
  $region19: #{_lambda_.3} parent=0 // pred_check_branch
    %351 = sbr.rel (0) target = $region21
  $region20: #{_lambda_.3} parent=0 // pred_region
    _
  $region21: #{_lambda_.3} parent=0 // pred_fallthru
    _

// kernel: _lambda_.2
$region0: #{_lambda_.2}
  #allocation0 [shape = 'u32[]', space=smem, size = 0x4, offset = 0x4, fixed_abs, tag = 'smem constant byte address 0x4 - core index']
  #allocation1 [shape = 'u32[144,128]{1,0:T(1,128)}', space=vmem, size = 0x12000, scoped, tag = 'internal scratch']
  %s0 = inlined_call_operand.vmem [shape: bf16[512,128], index: 0, kind: input, shape index: {}]
  %s1 = inlined_call_operand.vmem [shape: bf16[128,128], index: 1, kind: input, shape index: {}]
  %s2 = inlined_call_operand.vmem [shape: f32[512,128], index: 2, kind: output, shape index: {0}]
  %s3 = inlined_call_operand.vmem [shape: f32[16,128], index: 3, kind: output, shape index: {1}]
  %s4 = inlined_call_operand.vmem [shape: f32[16,128], index: 4, kind: output, shape index: {2}]
  %5 = xla_tuple %s2, %s3, %s4
  %s6 = sld [smem:[#allocation0]]
  $region61: #{_lambda_.2} parent=0
    _
  %s8 = ssub.s32 1, %s6
  %s9 = scalar_select 0, %s8, %s6
  loop: start=0, step=1, limit=6
  $region2: #{_lambda_.2} parent=0 // loop_pre_header
    _
  $region3: #{_lambda_.2} parent=0 // loop_header
    %s11 = sphi 0, %s15
    %p12 = scmp.ge.s32.totalorder %s11, 6
    %s18 = sphi 0, %s30
    %s19 = sphi 0, %s26
    %s20 = sphi 0, %s18
    %s21 = sphi 0, %s19
    %s22 = sphi 0, %s20
    %s23 = sphi 0, %s21
    %s37 = sphi 0, %s39
    %s40 = sphi 0, %s37
    %s41 = sphi 0, %s40
    %s57 = sphi 0, %s41
    %s61 = sphi 0, %s61
    %s63 = sphi 0, %s61
    %s64 = sphi 0, %s63
    %s78 = sphi 0, %s64
    %s88 = sphi 0, %s90
    %s91 = sphi 0, %s88
    %s92 = sphi 0, %s91
    %s108 = sphi 0, %s92
    %s114 = sphi 0, %s116
    %s117 = sphi 0, %s114
    %s118 = sphi 0, %s117
    %s134 = sphi 0, %s118
    %s140 = sphi 0, %s142
    %s143 = sphi 0, %s140
    %s144 = sphi 0, %s143
    %s160 = sphi 0, %s144
  $region4: #{_lambda_.2} parent=0 // loop_header_branch
    %14 = sbr.rel (%p12) target = $region8
  $region5: #{_lambda_.2} parent=0 // loop_body
    %s16 = ssub.s32 %s11, 1
    %s17 = ssub.s32 %s11, 2
    %s24 = sadd.s32 1, %s19
    %p25 = scmp.ge.s32.totalorder %s24, 2
    %s26 = scalar_select %p25, 0, %s24
    %s27 = sadd.s32 1, %s18
    %s28 = scalar_select %p25, %s27, %s18
    %p29 = scmp.ge.s32.totalorder %s28, 2
    %s30 = scalar_select %p29, 0, %s28
    %s31 = smul.u32 %s18, 2
    %s32 = sadd.s32 %s31, %s19
    %s33 = smul.u32 %s30, 2
    %s34 = sadd.s32 %s33, %s26
    %s35 = ssub.s32 %s32, %s34
    %p36 = scmp.eq.s32.totalorder %s35, 0
    %s38 = sadd.s32 %s37, 1
    %s39 = scalar_select %p36, %s37, %s38
    %p42 = pneg %p36
    %p43 = scmp.eq.s32.totalorder %s11, 3
    %p44 = por %p42, %p43
    %p45 = scmp.ne.s32.totalorder %s37, %s40
    %p46 = scmp.eq.s32.totalorder %s11, 0
    %p47 = por %p45, %p46
    %p48 = scmp.ne.s32.totalorder %s37, %s40
    %p49 = scmp.eq.s32.totalorder %s16, 3
    %p50 = por %p48, %p49
    %p51 = scmp.ne.s32.totalorder %s40, %s41
    %p52 = scmp.eq.s32.totalorder %s16, 0
    %p53 = por %p51, %p52
    %p54 = scmp.ne.s32.totalorder %s40, %s41
    %p55 = scmp.eq.s32.totalorder %s17, 3
    %p56 = por %p54, %p55
    %p58 = scmp.ne.s32.totalorder %s41, %s57
    %p59 = scmp.eq.s32.totalorder %s17, 0
    %p60 = por %p58, %p59
    %s62 = sadd.s32 %s61, 1
    %p65 = scmp.eq.s32.totalorder %s11, 3
    %p66 = scmp.ne.s32.totalorder %s61, %s63
    %p67 = scmp.eq.s32.totalorder %s11, 0
    %p68 = por %p66, %p67
    %p69 = scmp.ne.s32.totalorder %s61, %s63
    %p70 = scmp.eq.s32.totalorder %s16, 3
    %p71 = por %p69, %p70
    %p72 = scmp.ne.s32.totalorder %s63, %s64
    %p73 = scmp.eq.s32.totalorder %s16, 0
    %p74 = por %p72, %p73
    %p75 = scmp.ne.s32.totalorder %s63, %s64
    %p76 = scmp.eq.s32.totalorder %s17, 3
    %p77 = por %p75, %p76
    %p79 = scmp.ne.s32.totalorder %s64, %s78
    %p80 = scmp.eq.s32.totalorder %s17, 0
    %p81 = por %p79, %p80
    %s82 = smul.u32 %s18, 2
    %s83 = sadd.s32 %s82, %s19
    %s84 = smul.u32 %s30, 2
    %s85 = sadd.s32 %s84, %s26
    %s86 = ssub.s32 %s83, %s85
    %p87 = scmp.eq.s32.totalorder %s86, 0
    %s89 = sadd.s32 %s88, 1
    %s90 = scalar_select %p87, %s88, %s89
    %p93 = pneg %p87
    %p94 = scmp.eq.s32.totalorder %s11, 3
    %p95 = por %p93, %p94
    %p96 = scmp.ne.s32.totalorder %s88, %s91
    %p97 = scmp.eq.s32.totalorder %s11, 0
    %p98 = por %p96, %p97
    %p99 = scmp.ne.s32.totalorder %s88, %s91
    %p100 = scmp.eq.s32.totalorder %s16, 3
    %p101 = por %p99, %p100
    %p102 = scmp.ne.s32.totalorder %s91, %s92
    %p103 = scmp.eq.s32.totalorder %s16, 0
    %p104 = por %p102, %p103
    %p105 = scmp.ne.s32.totalorder %s91, %s92
    %p106 = scmp.eq.s32.totalorder %s17, 3
    %p107 = por %p105, %p106
    %p109 = scmp.ne.s32.totalorder %s92, %s108
    %p110 = scmp.eq.s32.totalorder %s17, 0
    %p111 = por %p109, %p110
    %s112 = ssub.s32 %s18, %s30
    %p113 = scmp.eq.s32.totalorder %s112, 0
    %s115 = sadd.s32 %s114, 1
    %s116 = scalar_select %p113, %s114, %s115
    %p119 = pneg %p113
    %p120 = scmp.eq.s32.totalorder %s11, 3
    %p121 = por %p119, %p120
    %p122 = scmp.ne.s32.totalorder %s114, %s117
    %p123 = scmp.eq.s32.totalorder %s11, 0
    %p124 = por %p122, %p123
    %p125 = scmp.ne.s32.totalorder %s114, %s117
    %p126 = scmp.eq.s32.totalorder %s16, 3
    %p127 = por %p125, %p126
    %p128 = scmp.ne.s32.totalorder %s117, %s118
    %p129 = scmp.eq.s32.totalorder %s16, 0
    %p130 = por %p128, %p129
    %p131 = scmp.ne.s32.totalorder %s117, %s118
    %p132 = scmp.eq.s32.totalorder %s17, 3
    %p133 = por %p131, %p132
    %p135 = scmp.ne.s32.totalorder %s118, %s134
    %p136 = scmp.eq.s32.totalorder %s17, 0
    %p137 = por %p135, %p136
    %s138 = ssub.s32 %s18, %s30
    %p139 = scmp.eq.s32.totalorder %s138, 0
    %s141 = sadd.s32 %s140, 1
    %s142 = scalar_select %p139, %s140, %s141
    %p145 = pneg %p139
    %p146 = scmp.eq.s32.totalorder %s11, 3
    %p147 = por %p145, %p146
    %p148 = scmp.ne.s32.totalorder %s140, %s143
    %p149 = scmp.eq.s32.totalorder %s11, 0
    %p150 = por %p148, %p149
    %p151 = scmp.ne.s32.totalorder %s140, %s143
    %p152 = scmp.eq.s32.totalorder %s16, 3
    %p153 = por %p151, %p152
    %p154 = scmp.ne.s32.totalorder %s143, %s144
    %p155 = scmp.eq.s32.totalorder %s16, 0
    %p156 = por %p154, %p155
    %p157 = scmp.ne.s32.totalorder %s143, %s144
    %p158 = scmp.eq.s32.totalorder %s17, 3
    %p159 = por %p157, %p158
    %p161 = scmp.ne.s32.totalorder %s144, %s160
    %p162 = scmp.eq.s32.totalorder %s17, 0
    %p163 = por %p161, %p162
    %p164 = scmp.le.s32.totalorder 1, %s11
    %p165 = scmp.lt.s32.totalorder %s11, 5
    %p166 = pnand %p164, %p165
    %p167 = pneg %p166
    // Predicated region
    $region9: #{_lambda_.2} parent=5 // pred_check
      _
    $region10: #{_lambda_.2} parent=5 // pred_check_branch
      %169 = sbr.rel (%p166) target = $region12
    $region11: #{_lambda_.2} parent=5 // pred_region
      %s170 = ssub.s32 %s11, 1
      // Predicated region
      $region13: #{_lambda_.2} parent=11 // pred_check
        %p171 = pneg %p74
      $region14: #{_lambda_.2} parent=11 // pred_check_branch
        %173 = sbr.rel (%p171) target = $region16
      $region15: #{_lambda_.2} parent=11 // pred_region
        _
      $region16: #{_lambda_.2} parent=11 // pred_fallthru
        _
    $region12: #{_lambda_.2} parent=5 // pred_fallthru
      _
    %p174 = scmp.lt.s32.totalorder %s11, 4
    // Predicated region
    $region17: #{_lambda_.2} parent=5 // pred_check
      %p175 = pneg %p174
    $region18: #{_lambda_.2} parent=5 // pred_check_branch
      %177 = sbr.rel (%p175) target = $region20
    $region19: #{_lambda_.2} parent=5 // pred_region
      // Predicated region
      $region21: #{_lambda_.2} parent=19 // pred_check
        %p178 = pneg %p47
      $region22: #{_lambda_.2} parent=19 // pred_check_branch
        %180 = sbr.rel (%p178) target = $region24
      $region23: #{_lambda_.2} parent=19 // pred_region
        %s181 = smul.u32 %s18, 2
        %s182 = sadd.s32 %s181, %s19
        %s183 = smul.u32 16, %s182
        %p184 = scmp.lt.s32.totalorder %s183, 63
        %s185 = scalar_select %p184, %s183, 63
        %s186 = smul.addr %s185, 4
        %s187 = scalar_lea.vmem %s0, %s186
        %s188 = smul.u32 %s18, 2
        %s189 = sadd.s32 %s188, %s19
        %s190 = smul.u32 16, %s189
      $region24: #{_lambda_.2} parent=19 // pred_fallthru
        _
    $region20: #{_lambda_.2} parent=5 // pred_fallthru
      _
    %p191 = scmp.le.s32.totalorder 1, %s11
    %p192 = scmp.lt.s32.totalorder %s11, 5
    %p193 = pnand %p191, %p192
    %p194 = pneg %p193
    // Predicated region
    $region25: #{_lambda_.2} parent=5 // pred_check
      _
    $region26: #{_lambda_.2} parent=5 // pred_check_branch
      %196 = sbr.rel (%p193) target = $region28
    $region27: #{_lambda_.2} parent=5 // pred_region
      %s197 = ssub.s32 %s11, 1
      %s198 = smul.u32 %s20, 2
      %s199 = sadd.s32 %s198, %s21
      %s200 = smul.u32 16, %s199
      %p201 = scmp.lt.s32.totalorder %s200, 63
      %s202 = scalar_select %p201, %s200, 63
      %s203 = smul.addr %s202, 4
      %s204 = scalar_lea.vmem %s0, %s203
      %p205 = pneg %p53
      %p206 = pneg %p50
      %p207 = pneg %p74
      %p208 = pneg %p71
      %p209 = pneg %p104
      %p210 = pneg %p101
      %s211 = smul.u32 %s20, 2
      %s212 = sadd.s32 %s211, %s21
      %s213 = smul.u32 16, %s212
      %p214 = scmp.lt.s32.totalorder %s213, 63
      %s215 = scalar_select %p214, %s213, 63
      %s216 = smul.addr %s215, 8
      %s217 = scalar_lea.vmem %s2, %s216
      %p218 = pneg %p130
      %p219 = pneg %p127
      %p220 = scmp.lt.s32.totalorder %s20, 1
      %s221 = scalar_select %p220, %s20, 1
      %s222 = smul.addr %s221, 8
      %s223 = scalar_lea.vmem %s3, %s222
      %p224 = pneg %p156
      %p225 = pneg %p153
      %p226 = scmp.lt.s32.totalorder %s20, 1
      %s227 = scalar_select %p226, %s20, 1
      %s228 = smul.addr %s227, 8
      %s229 = scalar_lea.vmem %s4, %s228
      %s230 = smul.u32 %s20, 2
      %s231 = sadd.s32 %s230, %s21
      %s232 = smul.u32 16, %s231
      %p233 = scmp.lt.s32.totalorder %s232, 63
      %s234 = scalar_select %p233, %s232, 63
      %s235 = smul.addr %s234, 4
      %s236 = scalar_lea.vmem %s0, %s235
      %s237 = smul.u32 %s20, 2
      %s238 = sadd.s32 %s237, %s21
      %s239 = smul.u32 16, %s238
      %s240 = smul.u32 %s20, 2
      %s241 = sadd.s32 %s240, %s21
      %s242 = smul.u32 16, %s241
      %p243 = scmp.lt.s32.totalorder %s242, 63
      %s244 = scalar_select %p243, %s242, 63
      %s245 = smul.addr %s244, 8
      %s246 = scalar_lea.vmem %s2, %s245
      %s247 = smul.u32 %s20, 2
      %s248 = sadd.s32 %s247, %s21
      %s249 = smul.u32 16, %s248
      %p250 = scmp.lt.s32.totalorder %s20, 1
      %s251 = scalar_select %p250, %s20, 1
      %s252 = smul.addr %s251, 8
      %s253 = scalar_lea.vmem %s3, %s252
      %p254 = scmp.lt.s32.totalorder %s20, 1
      %s255 = scalar_select %p254, %s20, 1
      %s256 = smul.addr %s255, 8
      %s257 = scalar_lea.vmem %s4, %s256
      %v259 = vld [vmem:[%s236] sm:$0xf]
      %v260 = vld [vmem:[%s236 + $0x4] sm:$0xf]
      %v261 = vld [vmem:[%s236 + $0x8] sm:$0xf]
      %v262 = vld [vmem:[%s236 + $0xc] sm:$0xf]
      %v263 = vld [vmem:[%s236 + $0x10] sm:$0xf]
      %v264 = vld [vmem:[%s236 + $0x14] sm:$0xf]
      %v265 = vld [vmem:[%s236 + $0x18] sm:$0xf]
      %v266 = vld [vmem:[%s236 + $0x1c] sm:$0xf]
      %v267 = vld [vmem:[%s236 + $0x20] sm:$0xf]
      %v268 = vld [vmem:[%s236 + $0x24] sm:$0xf]
      %v269 = vld [vmem:[%s236 + $0x28] sm:$0xf]
      %v270 = vld [vmem:[%s236 + $0x2c] sm:$0xf]
      %v271 = vld [vmem:[%s236 + $0x30] sm:$0xf]
      %v272 = vld [vmem:[%s236 + $0x34] sm:$0xf]
      %v273 = vld [vmem:[%s236 + $0x38] sm:$0xf]
      %v274 = vld [vmem:[%s236 + $0x3c] sm:$0xf]
      %v275 = vld [vmem:[%s1] sm:$0xf]
      %v276 = vld [vmem:[%s1 + $0x4] sm:$0xf]
      %v277 = vld [vmem:[%s1 + $0x8] sm:$0xf]
      %v278 = vld [vmem:[%s1 + $0xc] sm:$0xf]
      %v279 = vld [vmem:[%s1 + $0x10] sm:$0xf]
      %v280 = vld [vmem:[%s1 + $0x14] sm:$0xf]
      %v281 = vld [vmem:[%s1 + $0x18] sm:$0xf]
      %v282 = vld [vmem:[%s1 + $0x1c] sm:$0xf]
      %v283 = vld [vmem:[%s1 + $0x20] sm:$0xf]
      %v284 = vld [vmem:[%s1 + $0x24] sm:$0xf]
      %v285 = vld [vmem:[%s1 + $0x28] sm:$0xf]
      %v286 = vld [vmem:[%s1 + $0x2c] sm:$0xf]
      %v287 = vld [vmem:[%s1 + $0x30] sm:$0xf]
      %v288 = vld [vmem:[%s1 + $0x34] sm:$0xf]
      %v289 = vld [vmem:[%s1 + $0x38] sm:$0xf]
      %v290 = vld [vmem:[%s1 + $0x3c] sm:$0xf]
      %v307 = vunpack.c.l.b16 %v259
      %v308 = vunpack.c.l.b16 %v260
      %v309 = vunpack.c.l.b16 %v261
      %v310 = vunpack.c.l.b16 %v262
      %v311 = vunpack.c.l.b16 %v263
      %v312 = vunpack.c.l.b16 %v264
      %v313 = vunpack.c.l.b16 %v265
      %v314 = vunpack.c.l.b16 %v266
      %v315 = vunpack.c.l.b16 %v267
      %v316 = vunpack.c.l.b16 %v268
      %v317 = vunpack.c.l.b16 %v269
      %v318 = vunpack.c.l.b16 %v270
      %v319 = vunpack.c.l.b16 %v271
      %v320 = vunpack.c.l.b16 %v272
      %v321 = vunpack.c.l.b16 %v273
      %v322 = vunpack.c.l.b16 %v274
      %v323 = vpack.c.b16 %v308, %v307
      %v324 = vpack.c.b16 %v310, %v309
      %v325 = vpack.c.b16 %v312, %v311
      %v326 = vpack.c.b16 %v314, %v313
      %v327 = vpack.c.b16 %v316, %v315
      %v328 = vpack.c.b16 %v318, %v317
      %v329 = vpack.c.b16 %v320, %v319
      %v330 = vpack.c.b16 %v322, %v321
      %v355 = vunpack.c.l.b16 %v275
      %v356 = vunpack.c.l.b16 %v276
      %v357 = vunpack.c.l.b16 %v277
      %v358 = vunpack.c.l.b16 %v278
      %v359 = vunpack.c.l.b16 %v279
      %v360 = vunpack.c.l.b16 %v280
      %v361 = vunpack.c.l.b16 %v281
      %v362 = vunpack.c.l.b16 %v282
      %v363 = vunpack.c.l.b16 %v283
      %v364 = vunpack.c.l.b16 %v284
      %v365 = vunpack.c.l.b16 %v285
      %v366 = vunpack.c.l.b16 %v286
      %v367 = vunpack.c.l.b16 %v287
      %v368 = vunpack.c.l.b16 %v288
      %v369 = vunpack.c.l.b16 %v289
      %v370 = vunpack.c.l.b16 %v290
      %v371 = vpack.c.b16 %v356, %v355
      %v372 = vpack.c.b16 %v358, %v357
      %v373 = vpack.c.b16 %v360, %v359
      %v374 = vpack.c.b16 %v362, %v361
      %v375 = vpack.c.b16 %v364, %v363
      %v376 = vpack.c.b16 %v366, %v365
      %v377 = vpack.c.b16 %v368, %v367
      %v378 = vpack.c.b16 %v370, %v369
      %387 = vmatprep.subr.bf16.mxu0 0
      %388 = vmatpush1.bf16.msra.mxu0 %v371
      %389 = vmatprep.subr.bf16.mxu0 0
      %390 = vmatpush1.bf16.msra.mxu0 %v372
      %391 = vmatprep.subr.bf16.mxu0 0
      %392 = vmatpush1.bf16.msra.mxu0 %v373
      %393 = vmatprep.subr.bf16.mxu0 0
      %394 = vmatpush1.bf16.msra.mxu0 %v374
      %395 = vmatprep.subr.bf16.mxu0 0
      %396 = vmatpush1.bf16.msra.mxu0 %v375
      %397 = vmatprep.subr.bf16.mxu0 0
      %398 = vmatpush1.bf16.msra.mxu0 %v376
      %399 = vmatprep.subr.bf16.mxu0 0
      %400 = vmatpush1.bf16.msra.mxu0 %v377
      %401 = vmatprep.subr.bf16.mxu0 0
      %402 = vmatpush1.bf16.msra.mxu0 %v378
      %403 = vmatprep.subr.bf16.mxu0 0
      %404 = vmatpush1.bf16.msra.mxu0 0
      %405 = vmatprep.subr.bf16.mxu0 0
      %406 = vmatpush1.bf16.msra.mxu0 0
      %407 = vmatprep.subr.bf16.mxu0 0
      %408 = vmatpush1.bf16.msra.mxu0 0
      %409 = vmatprep.subr.bf16.mxu0 0
      %410 = vmatpush1.bf16.msra.mxu0 0
      %411 = vmatprep.subr.bf16.mxu0 0
      %412 = vmatpush1.bf16.msra.mxu0 0
      %413 = vmatprep.subr.bf16.mxu0 0
      %414 = vmatpush1.bf16.msra.mxu0 0
      %415 = vmatprep.subr.bf16.mxu0 0
      %416 = vmatpush1.bf16.msra.mxu0 0
      %417 = vmatprep.subr.bf16.mxu0 0
      %418 = vmatpush1.bf16.msra.mxu0 0
      %419 = vmatprep.mubr.bf16.mxu0 0
      %420 = vmatmul.mubr.bf16.gmra.mrb[0].mxu0 %v323
      %v421 = vpop.f32.mrb[0].mxu0
      %v422 = vadd.f32 0.0, %v421
      %v423 = vpop.f32.mrb[0].mxu0
      %v424 = vpop.f32.mrb[0].mxu0
      %v425 = vadd.f32 0.0, %v424
      %v426 = vpop.f32.mrb[0].mxu0
      %427 = vmatprep.mubr.bf16.mxu0 0
      %428 = vmatmul.mubr.bf16.gmra.mrb[0].mxu0 %v324
      %v429 = vpop.f32.mrb[0].mxu0
      %v430 = vadd.f32 0.0, %v429
      %v431 = vpop.f32.mrb[0].mxu0
      %v432 = vpop.f32.mrb[0].mxu0
      %v433 = vadd.f32 0.0, %v432
      %v434 = vpop.f32.mrb[0].mxu0
      %435 = vmatprep.mubr.bf16.mxu0 0
      %436 = vmatmul.mubr.bf16.gmra.mrb[0].mxu0 %v325
      %v437 = vpop.f32.mrb[0].mxu0
      %v438 = vadd.f32 0.0, %v437
      %v439 = vpop.f32.mrb[0].mxu0
      %v440 = vpop.f32.mrb[0].mxu0
      %v441 = vadd.f32 0.0, %v440
      %v442 = vpop.f32.mrb[0].mxu0
      %443 = vmatprep.mubr.bf16.mxu0 0
      %444 = vmatmul.mubr.bf16.gmra.mrb[0].mxu0 %v326
      %v445 = vpop.f32.mrb[0].mxu0
      %v446 = vadd.f32 0.0, %v445
      %v447 = vpop.f32.mrb[0].mxu0
      %v448 = vpop.f32.mrb[0].mxu0
      %v449 = vadd.f32 0.0, %v448
      %v450 = vpop.f32.mrb[0].mxu0
      %451 = vmatprep.mubr.bf16.mxu0 0
      %452 = vmatmul.mubr.bf16.gmra.mrb[0].mxu0 %v327
      %v453 = vpop.f32.mrb[0].mxu0
      %v454 = vadd.f32 0.0, %v453
      %v455 = vpop.f32.mrb[0].mxu0
      %v456 = vpop.f32.mrb[0].mxu0
      %v457 = vadd.f32 0.0, %v456
      %v458 = vpop.f32.mrb[0].mxu0
      %459 = vmatprep.mubr.bf16.mxu0 0
      %460 = vmatmul.mubr.bf16.gmra.mrb[0].mxu0 %v328
      %v461 = vpop.f32.mrb[0].mxu0
      %v462 = vadd.f32 0.0, %v461
      %v463 = vpop.f32.mrb[0].mxu0
      %v464 = vpop.f32.mrb[0].mxu0
      %v465 = vadd.f32 0.0, %v464
      %v466 = vpop.f32.mrb[0].mxu0
      %467 = vmatprep.mubr.bf16.mxu0 0
      %468 = vmatmul.mubr.bf16.gmra.mrb[0].mxu0 %v329
      %v469 = vpop.f32.mrb[0].mxu0
      %v470 = vadd.f32 0.0, %v469
      %v471 = vpop.f32.mrb[0].mxu0
      %v472 = vpop.f32.mrb[0].mxu0
      %v473 = vadd.f32 0.0, %v472
      %v474 = vpop.f32.mrb[0].mxu0
      %475 = vmatprep.mubr.bf16.mxu0 0
      %476 = vmatmul.mubr.bf16.gmra.mrb[0].mxu0 %v330
      %v477 = vpop.f32.mrb[0].mxu0
      %v478 = vadd.f32 0.0, %v477
      %v479 = vpop.f32.mrb[0].mxu0
      %v480 = vpop.f32.mrb[0].mxu0
      %v481 = vadd.f32 0.0, %v480
      %v482 = vpop.f32.mrb[0].mxu0
      %483 = vdwg.mxu0
      %484 = vst [vmem:[%s246] sm:$0xff] %v422
      %485 = vst [vmem:[%s246 + $0x8] sm:$0xff] %v425
      %486 = vst [vmem:[%s246 + $0x10] sm:$0xff] %v430
      %487 = vst [vmem:[%s246 + $0x18] sm:$0xff] %v433
      %488 = vst [vmem:[%s246 + $0x20] sm:$0xff] %v438
      %489 = vst [vmem:[%s246 + $0x28] sm:$0xff] %v441
      %490 = vst [vmem:[%s246 + $0x30] sm:$0xff] %v446
      %491 = vst [vmem:[%s246 + $0x38] sm:$0xff] %v449
      %492 = vst [vmem:[%s246 + $0x40] sm:$0xff] %v454
      %493 = vst [vmem:[%s246 + $0x48] sm:$0xff] %v457
      %494 = vst [vmem:[%s246 + $0x50] sm:$0xff] %v462
      %495 = vst [vmem:[%s246 + $0x58] sm:$0xff] %v465
      %496 = vst [vmem:[%s246 + $0x60] sm:$0xff] %v470
      %497 = vst [vmem:[%s246 + $0x68] sm:$0xff] %v473
      %498 = vst [vmem:[%s246 + $0x70] sm:$0xff] %v478
      %499 = vst [vmem:[%s246 + $0x78] sm:$0xff] %v481
      %p500 = scmp.eq.s32.totalorder %s21, 0
      // Predicated region
      $region29: #{_lambda_.2} parent=27 // pred_check
        %p501 = pneg %p500
      $region30: #{_lambda_.2} parent=27 // pred_check_branch
        %503 = sbr.rel (%p501) target = $region32
      $region31: #{_lambda_.2} parent=27 // pred_region
        %504 = vst [vmem:[%s253] sm:$0xff] 0.0
        %505 = vst [vmem:[%s257] sm:$0xff] 0.0
      $region32: #{_lambda_.2} parent=27 // pred_fallthru
        _
      %v506 = vld [vmem:[%s253] sm:$0xff]
      %v507 = vadd.f32 %v422, %v425
      %v508 = vadd.f32 %v507, %v430
      %v509 = vadd.f32 %v508, %v433
      %v510 = vadd.f32 %v509, %v438
      %v511 = vadd.f32 %v510, %v441
      %v512 = vadd.f32 %v511, %v446
      %v513 = vadd.f32 %v512, %v449
      %v514 = vadd.f32 %v513, %v454
      %v515 = vadd.f32 %v514, %v457
      %v516 = vadd.f32 %v515, %v462
      %v517 = vadd.f32 %v516, %v465
      %v518 = vadd.f32 %v517, %v470
      %v519 = vadd.f32 %v518, %v473
      %v520 = vadd.f32 %v519, %v478
      %v521 = vadd.f32 %v520, %v481
      %v522 = vadd.f32 %v506, %v521
      %523 = vst [vmem:[%s253] sm:$0xff] %v522
      %v524 = vld [vmem:[%s257] sm:$0xff]
      %v525 = vmul.f32 %v422, %v422
      %v526 = vmul.f32 %v425, %v425
      %v527 = vmul.f32 %v430, %v430
      %v528 = vmul.f32 %v433, %v433
      %v529 = vmul.f32 %v438, %v438
      %v530 = vmul.f32 %v441, %v441
      %v531 = vmul.f32 %v446, %v446
      %v532 = vmul.f32 %v449, %v449
      %v533 = vmul.f32 %v454, %v454
      %v534 = vmul.f32 %v457, %v457
      %v535 = vmul.f32 %v462, %v462
      %v536 = vmul.f32 %v465, %v465
      %v537 = vmul.f32 %v470, %v470
      %v538 = vmul.f32 %v473, %v473
      %v539 = vmul.f32 %v478, %v478
      %v540 = vmul.f32 %v481, %v481
      %v541 = vadd.f32 %v525, %v526
      %v542 = vadd.f32 %v541, %v527
      %v543 = vadd.f32 %v542, %v528
      %v544 = vadd.f32 %v543, %v529
      %v545 = vadd.f32 %v544, %v530
      %v546 = vadd.f32 %v545, %v531
      %v547 = vadd.f32 %v546, %v532
      %v548 = vadd.f32 %v547, %v533
      %v549 = vadd.f32 %v548, %v534
      %v550 = vadd.f32 %v549, %v535
      %v551 = vadd.f32 %v550, %v536
      %v552 = vadd.f32 %v551, %v537
      %v553 = vadd.f32 %v552, %v538
      %v554 = vadd.f32 %v553, %v539
      %v555 = vadd.f32 %v554, %v540
      %v556 = vadd.f32 %v524, %v555
      %557 = vst [vmem:[%s257] sm:$0xff] %v556
      %s558 = smul.u32 %s20, 2
      %s559 = sadd.s32 %s558, %s21
      %s560 = smul.u32 16, %s559
      %p561 = scmp.lt.s32.totalorder %s560, 63
      %s562 = scalar_select %p561, %s560, 63
      %s563 = smul.addr %s562, 8
      %s564 = scalar_lea.vmem %s2, %s563
      %p565 = scmp.lt.s32.totalorder %s20, 1
      %s566 = scalar_select %p565, %s20, 1
      %s567 = smul.addr %s566, 8
      %s568 = scalar_lea.vmem %s3, %s567
      %p569 = scmp.lt.s32.totalorder %s20, 1
      %s570 = scalar_select %p569, %s20, 1
      %s571 = smul.addr %s570, 8
      %s572 = scalar_lea.vmem %s4, %s571
      // Predicated region
      $region33: #{_lambda_.2} parent=27 // pred_check
        %p573 = pneg %p101
      $region34: #{_lambda_.2} parent=27 // pred_check_branch
        %575 = sbr.rel (%p573) target = $region36
      $region35: #{_lambda_.2} parent=27 // pred_region
        %s576 = smul.u32 %s20, 2
        %s577 = sadd.s32 %s576, %s21
        %s578 = smul.u32 16, %s577
      $region36: #{_lambda_.2} parent=27 // pred_fallthru
        _
      // Predicated region
      $region37: #{_lambda_.2} parent=27 // pred_check
        %p579 = pneg %p127
      $region38: #{_lambda_.2} parent=27 // pred_check_branch
        %581 = sbr.rel (%p579) target = $region40
      $region39: #{_lambda_.2} parent=27 // pred_region
        _
      $region40: #{_lambda_.2} parent=27 // pred_fallthru
        _
      // Predicated region
      $region41: #{_lambda_.2} parent=27 // pred_check
        %p582 = pneg %p153
      $region42: #{_lambda_.2} parent=27 // pred_check_branch
        %584 = sbr.rel (%p582) target = $region44
      $region43: #{_lambda_.2} parent=27 // pred_region
        _
      $region44: #{_lambda_.2} parent=27 // pred_fallthru
        _
    $region28: #{_lambda_.2} parent=5 // pred_fallthru
      _
    %p585 = scmp.le.s32.totalorder 2, %s11
    // Predicated region
    $region45: #{_lambda_.2} parent=5 // pred_check
      %p586 = pneg %p585
    $region46: #{_lambda_.2} parent=5 // pred_check_branch
      %588 = sbr.rel (%p586) target = $region48
    $region47: #{_lambda_.2} parent=5 // pred_region
      %s589 = ssub.s32 %s11, 2
      // Predicated region
      $region49: #{_lambda_.2} parent=47 // pred_check
        %p590 = pneg %p107
      $region50: #{_lambda_.2} parent=47 // pred_check_branch
        %592 = sbr.rel (%p590) target = $region52
      $region51: #{_lambda_.2} parent=47 // pred_region
        %s593 = smul.u32 %s22, 2
        %s594 = sadd.s32 %s593, %s23
        %s595 = smul.u32 16, %s594
        %p596 = scmp.lt.s32.totalorder %s595, 63
        %s597 = scalar_select %p596, %s595, 63
        %s598 = smul.addr %s597, 8
        %s599 = scalar_lea.vmem %s2, %s598
      $region52: #{_lambda_.2} parent=47 // pred_fallthru
        _
      // Predicated region
      $region53: #{_lambda_.2} parent=47 // pred_check
        %p600 = pneg %p133
      $region54: #{_lambda_.2} parent=47 // pred_check_branch
        %602 = sbr.rel (%p600) target = $region56
      $region55: #{_lambda_.2} parent=47 // pred_region
        %p603 = scmp.lt.s32.totalorder %s22, 1
        %s604 = scalar_select %p603, %s22, 1
        %s605 = smul.addr %s604, 8
        %s606 = scalar_lea.vmem %s3, %s605
      $region56: #{_lambda_.2} parent=47 // pred_fallthru
        _
      // Predicated region
      $region57: #{_lambda_.2} parent=47 // pred_check
        %p607 = pneg %p159
      $region58: #{_lambda_.2} parent=47 // pred_check_branch
        %609 = sbr.rel (%p607) target = $region60
      $region59: #{_lambda_.2} parent=47 // pred_region
        %p610 = scmp.lt.s32.totalorder %s22, 1
        %s611 = scalar_select %p610, %s22, 1
        %s612 = smul.addr %s611, 8
        %s613 = scalar_lea.vmem %s4, %s612
      $region60: #{_lambda_.2} parent=47 // pred_fallthru
        _
    $region48: #{_lambda_.2} parent=5 // pred_fallthru
      _
  $region6: #{_lambda_.2} parent=0 // loop_footer
    %s15 = sadd.s32 1, %s11
  $region7: #{_lambda_.2} parent=0 // loop_footer_branch
    %10 = sbr.rel target = $region3
  $region8: #{_lambda_.2} parent=0 // loop_exit
    _

</llo_original>
